<compile_context>
chip_gen: v6e
topology: v6e:2x2x1
jax: 0.10.0
libtpu: 0.0.40
codegen_flags: <defaults>
</compile_context>

<pallas_src>
import functools

import jax
import jax.numpy as jnp
from jax.experimental import pallas as pl
from jax.experimental.pallas import tpu as pltpu


def _round_up(x, m):
    return ((x + m - 1) // m) * m


def mlp_kernel(x_ref, w_ref, b_ref, o_ref, *, layer_specs):
    """Fused 5-layer MLP for one batch tile (batch on lanes).

    x_ref : (tile_b, input_size) f32   natural layout straight from HBM
    w_ref : (rows, max_in)       bf16  packed weights, PyTorch (out, in) layout per segment
    b_ref : (rows, 1)            f32   packed biases
    o_ref : (1, tile_b)          f32   lane-dense output
    layer_specs : static tuple of (row_offset, in_k, out_k) per layer.
    Dropout is eval-mode identity, so it is omitted.
    """
    # One in-kernel transpose puts the batch on the lane axis for every matmul; cast to bf16
    # only as MXU input (elementwise math stays f32).
    h = x_ref[...].T.astype(jnp.bfloat16)                 # (input_size, tile_b)

    n_layers = len(layer_specs)
    for k, (off, in_k, out_k) in enumerate(layer_specs):
        w = w_ref[off:off + out_k, 0:in_k]                # (out_k, in_k) bf16, static ref slice
        b = b_ref[off:off + out_k, :]                     # (out_k, 1)    f32
        a = jnp.dot(w, h, preferred_element_type=jnp.float32) + b
        if k < n_layers - 1:
            # Linear -> ReLU (dropout is a no-op in eval mode).
            h = jnp.maximum(a, 0.0).astype(jnp.bfloat16)
        else:
            # fc5 -> Sigmoid, lane-dense store.
            o_ref[...] = jax.nn.sigmoid(a).astype(o_ref.dtype)


def pack_params(params):
    """Pack the (W, b) pairs into one bf16 weight slab + one f32 bias slab (3 kernel operands).

    Each weight keeps its PyTorch (out_features, in_features) layout; row segment k starts at a
    16-aligned offset (bf16 sublane packing) and columns are zero-padded to the max fan-in.
    This is one-time parameter prep (≈10 KiB total), done outside the per-call hot path.
    """
    max_in = max(W.shape[1] for W, _ in params)
    offsets, off = [], 0
    for W, _ in params:
        offsets.append(off)
        off += _round_up(W.shape[0], 16)
    total_rows = _round_up(off, 16)

    w_all = jnp.zeros((total_rows, max_in), jnp.bfloat16)
    b_all = jnp.zeros((total_rows, 1), jnp.float32)
    layer_specs = []
    for (W, b), o in zip(params, offsets):
        out_k, in_k = W.shape
        w_all = w_all.at[o:o + out_k, :in_k].set(jnp.asarray(W, jnp.bfloat16))
        b_all = b_all.at[o:o + out_k, 0].set(jnp.asarray(b, jnp.float32))
        layer_specs.append((o, in_k, out_k))
    return w_all, b_all, tuple(layer_specs)


def dajare_predictor(x, w_all, b_all, layer_specs, *, tile_b=None):
    """x: (B, input_size) float32.  w_all/b_all/layer_specs from pack_params()."""
    B, input_size = x.shape
    assert layer_specs[0][1] == input_size, "packed params do not match input_size"

    if tile_b is None:
        # Default: one grid step (single-TC chips pay pure overhead for extra steps).
        # Only split for v7x megacore when each core gets >= ~2k rows of work.
        tile_b = 2048 if (B >= 4096 and B % 2048 == 0) else B
    tile_b = min(tile_b, B)
    assert B % tile_b == 0, "batch must be divisible by tile_b"
    num_tiles = B // tile_b

    in_specs = [
        pl.BlockSpec((tile_b, input_size), lambda i: (i, 0)),   # x tile, natural layout
        pl.BlockSpec(w_all.shape, lambda i: (0, 0)),            # packed weights, resident
        pl.BlockSpec(b_all.shape, lambda i: (0, 0)),            # packed biases, resident
    ]
    out_spec = pl.BlockSpec((1, tile_b), lambda i: (0, i))      # lane-dense output

    flops = sum(2 * B * in_k * out_k for (_, in_k, out_k) in layer_specs)
    bytes_accessed = x.size * 4 + w_all.size * 2 + b_all.size * 4 + B * 4

    out = pl.pallas_call(
        functools.partial(mlp_kernel, layer_specs=layer_specs),
        out_shape=jax.ShapeDtypeStruct((1, B), jnp.float32),
        grid_spec=pltpu.PrefetchScalarGridSpec(
            num_scalar_prefetch=0,
            grid=(num_tiles,),
            in_specs=in_specs,
            out_specs=out_spec,
        ),
        compiler_params=pltpu.CompilerParams(
            # Batch tiles are independent; only meaningful on v7x when num_tiles > 1.
            dimension_semantics=("parallel",) if num_tiles > 1 else ("arbitrary",),
        ),
        cost_estimate=pl.CostEstimate(
            flops=flops,
            transcendentals=B,                     # one sigmoid per row
            bytes_accessed=bytes_accessed,
        ),
    )(x, w_all, b_all)

    # (1, B) -> (B, 1): order-preserving layout plumbing.
    return out.reshape(B, 1)


def init_params(key, input_size, hidden_sizes):
    """Deterministic init mimicking nn.Linear's U(-1/sqrt(fan_in), +1/sqrt(fan_in)).
    Weights kept in PyTorch layout (out_features, in_features)."""
    dims = [input_size] + list(hidden_sizes) + [1]
    params = []
    for i in range(len(dims) - 1):
        fan_in, fan_out = dims[i], dims[i + 1]
        key, kw, kb = jax.random.split(key, 3)
        bound = 1.0 / jnp.sqrt(fan_in)
        W = jax.random.uniform(kw, (fan_out, fan_in), jnp.float32, -bound, bound)
        b = jax.random.uniform(kb, (fan_out,), jnp.float32, -bound, bound)
        params.append((W, b))
    return params


def reference_forward(x, params):
    """Pure-JAX reference of the PyTorch forward (eval mode), precision-matched to the kernel:
    bf16 matmul inputs, f32 accumulation and f32 elementwise math."""
    h = jnp.asarray(x, jnp.bfloat16)
    for (W, b) in params[:-1]:
        a = jnp.dot(h, jnp.asarray(W, jnp.bfloat16).T,
                    preferred_element_type=jnp.float32) + b
        h = jnp.maximum(a, 0.0).astype(jnp.bfloat16)
    W5, b5 = params[-1]
    y = jnp.dot(h, jnp.asarray(W5, jnp.bfloat16).T,
                preferred_element_type=jnp.float32) + b5
    return jax.nn.sigmoid(y)


if __name__ == "__main__":
    key = jax.random.PRNGKey(0)

    # Shapes consistent with the module: input_size=64, 4 hidden layers, scalar output.
    input_size = 64
    hidden_sizes = [64, 48, 32, 16]   # stand-ins for Optuna's hidden_size1..4
    batch = 256                       # small batch -> single grid step

    key, kx, kp = jax.random.split(key, 3)
    x = jax.random.normal(kx, (batch, input_size), jnp.float32)
    params = init_params(kp, input_size, hidden_sizes)

    w_all, b_all, layer_specs = pack_params(params)      # one-time parameter packing
    out = dajare_predictor(x, w_all, b_all, layer_specs)
    out = jax.block_until_ready(out)

    ref = reference_forward(x, params)
    assert out.shape == (batch, 1)
    assert jnp.allclose(out, ref, atol=5e-4, rtol=5e-4), "mismatch vs reference"

    print("KERNEL_OK")
</pallas_src>

<mosaic_0001>
module attributes {stable_mosaic.version = 11 : i64} {
  func.func @mlp_kernel(%arg0: i32, %arg1: memref<256x64xf32, #tpu.memory_space<vmem>>, %arg2: memref<176x64xbf16, #tpu.memory_space<vmem>>, %arg3: memref<176x1xf32, #tpu.memory_space<vmem>>, %arg4: memref<1x256xf32, #tpu.memory_space<vmem>>) attributes {dimension_semantics = [#tpu.dimension_semantics<arbitrary>], iteration_bounds = array<i64: 1>, scalar_prefetch = 0 : i64, scratch_operands = 0 : i64, tpu.core_type = #tpu.core_type<tc>, window_params = [{transform_indices = @transform_0, window_bounds = array<i64: 256, 64>}, {pipeline_mode = #tpu.pipeline_mode<synchronous>, transform_indices = @transform_1, window_bounds = array<i64: 176, 64>}, {pipeline_mode = #tpu.pipeline_mode<synchronous>, transform_indices = @transform_2, window_bounds = array<i64: 176, 1>}, {transform_indices = @transform_3, window_bounds = array<i64: 1, 256>}]} {
    %c0 = arith.constant 0 : index
    %c0_0 = arith.constant 0 : index
    %0 = vector.load %arg1[%c0, %c0_0] : memref<256x64xf32, #tpu.memory_space<vmem>>, vector<256x64xf32>
    %1 = tpu.transpose %0, [1, 0] : vector<256x64xf32> -> vector<64x256xf32>
    %2 = arith.truncf %1 : vector<64x256xf32> to vector<64x256xbf16>
    %c0_1 = arith.constant 0 : index
    %c0_2 = arith.constant 0 : index
    %3 = vector.load %arg2[%c0_1, %c0_2] : memref<176x64xbf16, #tpu.memory_space<vmem>>, vector<64x64xbf16>
    %c0_3 = arith.constant 0 : index
    %c0_4 = arith.constant 0 : index
    %4 = vector.load %arg3[%c0_3, %c0_4] : memref<176x1xf32, #tpu.memory_space<vmem>>, vector<64x1xf32>
    %cst = arith.constant dense<0.000000e+00> : vector<64x256xf32>
    %5 = tpu.matmul %3, %2, %cst {dimension_numbers = #tpu.dot_dimension_numbers<[1], [0], [0], [1], [0, 0, 1, 1], [], []>} : vector<64x64xbf16>, vector<64x256xbf16>, vector<64x256xf32> -> vector<64x256xf32>
    %6 = vector.broadcast %4 : vector<64x1xf32> to vector<64x256xf32>
    %7 = arith.addf %5, %6 : vector<64x256xf32>
    %cst_5 = arith.constant 0.000000e+00 : f32
    %8 = vector.broadcast %cst_5 : f32 to vector<64x256xf32>
    %9 = arith.maximumf %7, %8 : vector<64x256xf32>
    %10 = arith.truncf %9 : vector<64x256xf32> to vector<64x256xbf16>
    %c64 = arith.constant 64 : index
    %c0_6 = arith.constant 0 : index
    %11 = vector.load %arg2[%c64, %c0_6] : memref<176x64xbf16, #tpu.memory_space<vmem>>, vector<48x64xbf16>
    %c64_7 = arith.constant 64 : index
    %c0_8 = arith.constant 0 : index
    %12 = vector.load %arg3[%c64_7, %c0_8] : memref<176x1xf32, #tpu.memory_space<vmem>>, vector<48x1xf32>
    %cst_9 = arith.constant dense<0.000000e+00> : vector<48x256xf32>
    %13 = tpu.matmul %11, %10, %cst_9 {dimension_numbers = #tpu.dot_dimension_numbers<[1], [0], [0], [1], [0, 0, 1, 1], [], []>} : vector<48x64xbf16>, vector<64x256xbf16>, vector<48x256xf32> -> vector<48x256xf32>
    %14 = vector.broadcast %12 : vector<48x1xf32> to vector<48x256xf32>
    %15 = arith.addf %13, %14 : vector<48x256xf32>
    %cst_10 = arith.constant 0.000000e+00 : f32
    %16 = vector.broadcast %cst_10 : f32 to vector<48x256xf32>
    %17 = arith.maximumf %15, %16 : vector<48x256xf32>
    %18 = arith.truncf %17 : vector<48x256xf32> to vector<48x256xbf16>
    %c112 = arith.constant 112 : index
    %c0_11 = arith.constant 0 : index
    %19 = vector.load %arg2[%c112, %c0_11] : memref<176x64xbf16, #tpu.memory_space<vmem>>, vector<32x48xbf16>
    %c112_12 = arith.constant 112 : index
    %c0_13 = arith.constant 0 : index
    %20 = vector.load %arg3[%c112_12, %c0_13] : memref<176x1xf32, #tpu.memory_space<vmem>>, vector<32x1xf32>
    %cst_14 = arith.constant dense<0.000000e+00> : vector<32x256xf32>
    %21 = tpu.matmul %19, %18, %cst_14 {dimension_numbers = #tpu.dot_dimension_numbers<[1], [0], [0], [1], [0, 0, 1, 1], [], []>} : vector<32x48xbf16>, vector<48x256xbf16>, vector<32x256xf32> -> vector<32x256xf32>
    %22 = vector.broadcast %20 : vector<32x1xf32> to vector<32x256xf32>
    %23 = arith.addf %21, %22 : vector<32x256xf32>
    %cst_15 = arith.constant 0.000000e+00 : f32
    %24 = vector.broadcast %cst_15 : f32 to vector<32x256xf32>
    %25 = arith.maximumf %23, %24 : vector<32x256xf32>
    %26 = arith.truncf %25 : vector<32x256xf32> to vector<32x256xbf16>
    %c144 = arith.constant 144 : index
    %c0_16 = arith.constant 0 : index
    %27 = vector.load %arg2[%c144, %c0_16] : memref<176x64xbf16, #tpu.memory_space<vmem>>, vector<16x32xbf16>
    %c144_17 = arith.constant 144 : index
    %c0_18 = arith.constant 0 : index
    %28 = vector.load %arg3[%c144_17, %c0_18] : memref<176x1xf32, #tpu.memory_space<vmem>>, vector<16x1xf32>
    %cst_19 = arith.constant dense<0.000000e+00> : vector<16x256xf32>
    %29 = tpu.matmul %27, %26, %cst_19 {dimension_numbers = #tpu.dot_dimension_numbers<[1], [0], [0], [1], [0, 0, 1, 1], [], []>} : vector<16x32xbf16>, vector<32x256xbf16>, vector<16x256xf32> -> vector<16x256xf32>
    %30 = vector.broadcast %28 : vector<16x1xf32> to vector<16x256xf32>
    %31 = arith.addf %29, %30 : vector<16x256xf32>
    %cst_20 = arith.constant 0.000000e+00 : f32
    %32 = vector.broadcast %cst_20 : f32 to vector<16x256xf32>
    %33 = arith.maximumf %31, %32 : vector<16x256xf32>
    %34 = arith.truncf %33 : vector<16x256xf32> to vector<16x256xbf16>
    %c160 = arith.constant 160 : index
    %c0_21 = arith.constant 0 : index
    %35 = vector.load %arg2[%c160, %c0_21] : memref<176x64xbf16, #tpu.memory_space<vmem>>, vector<1x16xbf16>
    %c160_22 = arith.constant 160 : index
    %c0_23 = arith.constant 0 : index
    %36 = vector.load %arg3[%c160_22, %c0_23] : memref<176x1xf32, #tpu.memory_space<vmem>>, vector<1x1xf32>
    %cst_24 = arith.constant dense<0.000000e+00> : vector<1x256xf32>
    %37 = tpu.matmul %35, %34, %cst_24 {dimension_numbers = #tpu.dot_dimension_numbers<[1], [0], [0], [1], [0, 0, 1, 1], [], []>} : vector<1x16xbf16>, vector<16x256xbf16>, vector<1x256xf32> -> vector<1x256xf32>
    %38 = vector.broadcast %36 : vector<1x1xf32> to vector<1x256xf32>
    %39 = arith.addf %37, %38 : vector<1x256xf32>
    %40 = arith.negf %39 : vector<1x256xf32>
    %41 = math.exp %40 : vector<1x256xf32>
    %cst_25 = arith.constant 1.000000e+00 : f32
    %42 = vector.broadcast %cst_25 : f32 to vector<1x256xf32>
    %43 = arith.addf %42, %41 : vector<1x256xf32>
    %44 = arith.divf %42, %43 : vector<1x256xf32>
    %c0_26 = arith.constant 0 : index
    %c0_27 = arith.constant 0 : index
    %45 = vector.load %arg4[%c0_26, %c0_27] : memref<1x256xf32, #tpu.memory_space<vmem>>, vector<1x256xf32>
    tpu.vector_store %arg4[%c0_26, %c0_27], %44 {strides = array<i32>} : memref<1x256xf32, #tpu.memory_space<vmem>>, vector<1x256xf32>,
    return
  }
  func.func @transform_0(%arg0: i32) -> (i32, i32) {
    %c0_i32 = arith.constant 0 : i32
    %c0_i32_0 = arith.constant 0 : i32
    return %arg0, %c0_i32 : i32, i32
  }
  func.func @transform_1(%arg0: i32) -> (i32, i32) {
    %c0_i32 = arith.constant 0 : i32
    %c0_i32_0 = arith.constant 0 : i32
    %c0_i32_1 = arith.constant 0 : i32
    return %c0_i32, %c0_i32_0 : i32, i32
  }
  func.func @transform_2(%arg0: i32) -> (i32, i32) {
    %c0_i32 = arith.constant 0 : i32
    %c0_i32_0 = arith.constant 0 : i32
    %c0_i32_1 = arith.constant 0 : i32
    return %c0_i32, %c0_i32_0 : i32, i32
  }
  func.func @transform_3(%arg0: i32) -> (i32, i32) {
    %c0_i32 = arith.constant 0 : i32
    %c0_i32_0 = arith.constant 0 : i32
    return %c0_i32, %arg0 : i32, i32
  }
}

</mosaic_0001>

<llo_original>
// kernel: tpu_custom_call.1
$region0: #{tpu_custom_call.1}
  #allocation0 [shape = 'u32[]', space=smem, size = 0x4, offset = 0x4, fixed_abs, tag = 'smem constant byte address 0x4 - core index']
  #allocation1 [shape = 'u32[144,128]{1,0:T(1,128)}', space=vmem, size = 0x12000, scoped, tag = 'internal scratch']
  %s0 = inlined_call_operand.vmem [shape: f32[256,64], index: 0, kind: input, shape index: {}]
  %s1 = inlined_call_operand.vmem [shape: bf16[176,64], index: 1, kind: input, shape index: {}]
  %s2 = inlined_call_operand.vmem [shape: f32[176,1], index: 2, kind: input, shape index: {}]
  %s3 = inlined_call_operand.hbm [shape: f32[1,256], index: 3, kind: output, shape index: {}]
  %s4 = sld [smem:[#allocation0]]
  $region22: #{tpu_custom_call.1} parent=0
    _
  %s6 = ssub.s32 1, %s4
  %s7 = scalar_select 0, %s6, %s4
  $region1: #{tpu_custom_call.1} parent=0
    #allocation2 [shape = 'u8[1024]{0}', space=vmem, size = 0x400, scoped, tag = 'output window, operand 0, single buffered']
    #allocation3 [shape = 's32[1]{0}', space=sflag, size = 0x4, scoped, tag = 'scoped memory for tpu_custom_call.1']
    %8 = vsyncpa [#allocation3], 0
    // Predicated region
    $region2: #{tpu_custom_call.1} parent=1 // pred_check
      _
    $region3: #{tpu_custom_call.1} parent=1 // pred_check_branch
      %10 = sbr.rel (0) target = $region5
    $region4: #{tpu_custom_call.1} parent=1 // pred_region
      _
    $region5: #{tpu_custom_call.1} parent=1 // pred_fallthru
      _
    // Predicated region
    $region6: #{tpu_custom_call.1} parent=1 // pred_check
      _
    $region7: #{tpu_custom_call.1} parent=1 // pred_check_branch
      %12 = sbr.rel (0) target = $region9
    $region8: #{tpu_custom_call.1} parent=1 // pred_region
      _
    $region9: #{tpu_custom_call.1} parent=1 // pred_fallthru
      _
    // Predicated region
    $region10: #{tpu_custom_call.1} parent=1 // pred_check
      _
    $region11: #{tpu_custom_call.1} parent=1 // pred_check_branch
      %14 = sbr.rel (0) target = $region13
    $region12: #{tpu_custom_call.1} parent=1 // pred_region
      _
    $region13: #{tpu_custom_call.1} parent=1 // pred_fallthru
      _
    %v16 = vld [vmem:[%s0] sm:$0xff]
    %v17 = vld [vmem:[%s0 + $0x8] sm:$0xff]
    %v18 = vld [vmem:[%s0 + $0x10] sm:$0xff]
    %v19 = vld [vmem:[%s0 + $0x18] sm:$0xff]
    %v20 = vld [vmem:[%s0 + $0x20] sm:$0xff]
    %v21 = vld [vmem:[%s0 + $0x28] sm:$0xff]
    %v22 = vld [vmem:[%s0 + $0x30] sm:$0xff]
    %v23 = vld [vmem:[%s0 + $0x38] sm:$0xff]
    %v24 = vld [vmem:[%s0 + $0x40] sm:$0xff]
    %v25 = vld [vmem:[%s0 + $0x48] sm:$0xff]
    %v26 = vld [vmem:[%s0 + $0x50] sm:$0xff]
    %v27 = vld [vmem:[%s0 + $0x58] sm:$0xff]
    %v28 = vld [vmem:[%s0 + $0x60] sm:$0xff]
    %v29 = vld [vmem:[%s0 + $0x68] sm:$0xff]
    %v30 = vld [vmem:[%s0 + $0x70] sm:$0xff]
    %v31 = vld [vmem:[%s0 + $0x78] sm:$0xff]
    %v32 = vld [vmem:[%s0 + $0x80] sm:$0xff]
    %v33 = vld [vmem:[%s0 + $0x88] sm:$0xff]
    %v34 = vld [vmem:[%s0 + $0x90] sm:$0xff]
    %v35 = vld [vmem:[%s0 + $0x98] sm:$0xff]
    %v36 = vld [vmem:[%s0 + $0xa0] sm:$0xff]
    %v37 = vld [vmem:[%s0 + $0xa8] sm:$0xff]
    %v38 = vld [vmem:[%s0 + $0xb0] sm:$0xff]
    %v39 = vld [vmem:[%s0 + $0xb8] sm:$0xff]
    %v40 = vld [vmem:[%s0 + $0xc0] sm:$0xff]
    %v41 = vld [vmem:[%s0 + $0xc8] sm:$0xff]
    %v42 = vld [vmem:[%s0 + $0xd0] sm:$0xff]
    %v43 = vld [vmem:[%s0 + $0xd8] sm:$0xff]
    %v44 = vld [vmem:[%s0 + $0xe0] sm:$0xff]
    %v45 = vld [vmem:[%s0 + $0xe8] sm:$0xff]
    %v46 = vld [vmem:[%s0 + $0xf0] sm:$0xff]
    %v47 = vld [vmem:[%s0 + $0xf8] sm:$0xff]
    %48 = vxpose.xlu0.b32.start [1/16] %v16, 128
    %49 = vxpose.xlu0.b32.cont [2/16] %v17, 128
    %50 = vxpose.xlu0.b32.cont [3/16] %v18, 128
    %51 = vxpose.xlu0.b32.cont [4/16] %v19, 128
    %52 = vxpose.xlu0.b32.cont [5/16] %v20, 128
    %53 = vxpose.xlu0.b32.cont [6/16] %v21, 128
    %54 = vxpose.xlu0.b32.cont [7/16] %v22, 128
    %55 = vxpose.xlu0.b32.cont [8/16] %v23, 128
    %56 = vxpose.xlu0.b32.cont [9/16] %v24, 128
    %57 = vxpose.xlu0.b32.cont [10/16] %v25, 128
    %58 = vxpose.xlu0.b32.cont [11/16] %v26, 128
    %59 = vxpose.xlu0.b32.cont [12/16] %v27, 128
    %60 = vxpose.xlu0.b32.cont [13/16] %v28, 128
    %61 = vxpose.xlu0.b32.cont [14/16] %v29, 128
    %62 = vxpose.xlu0.b32.cont [15/16] %v30, 128
    %63 = vxpose.xlu0.b32.end [16/16] %v31, 128
    %v64 = vpop.trf.xlu0
    %v65 = vpop.trf.xlu0
    %v66 = vpop.trf.xlu0
    %v67 = vpop.trf.xlu0
    %v68 = vpop.trf.xlu0
    %v69 = vpop.trf.xlu0
    %v70 = vpop.trf.xlu0
    %v71 = vpop.trf.xlu0
    %v72 = vpop.trf.xlu0
    %v73 = vpop.trf.xlu0
    %v74 = vpop.trf.xlu0
    %v75 = vpop.trf.xlu0
    %v76 = vpop.trf.xlu0
    %v77 = vpop.trf.xlu0
    %v78 = vpop.trf.xlu0
    %v79 = vpop.trf.xlu0
    %80 = vxpose.xlu0.b32.start [1/16] %v32, 128
    %81 = vxpose.xlu0.b32.cont [2/16] %v33, 128
    %82 = vxpose.xlu0.b32.cont [3/16] %v34, 128
    %83 = vxpose.xlu0.b32.cont [4/16] %v35, 128
    %84 = vxpose.xlu0.b32.cont [5/16] %v36, 128
    %85 = vxpose.xlu0.b32.cont [6/16] %v37, 128
    %86 = vxpose.xlu0.b32.cont [7/16] %v38, 128
    %87 = vxpose.xlu0.b32.cont [8/16] %v39, 128
    %88 = vxpose.xlu0.b32.cont [9/16] %v40, 128
    %89 = vxpose.xlu0.b32.cont [10/16] %v41, 128
    %90 = vxpose.xlu0.b32.cont [11/16] %v42, 128
    %91 = vxpose.xlu0.b32.cont [12/16] %v43, 128
    %92 = vxpose.xlu0.b32.cont [13/16] %v44, 128
    %93 = vxpose.xlu0.b32.cont [14/16] %v45, 128
    %94 = vxpose.xlu0.b32.cont [15/16] %v46, 128
    %95 = vxpose.xlu0.b32.end [16/16] %v47, 128
    %v96 = vpop.trf.xlu0
    %v97 = vpop.trf.xlu0
    %v98 = vpop.trf.xlu0
    %v99 = vpop.trf.xlu0
    %v100 = vpop.trf.xlu0
    %v101 = vpop.trf.xlu0
    %v102 = vpop.trf.xlu0
    %v103 = vpop.trf.xlu0
    %v104 = vpop.trf.xlu0
    %v105 = vpop.trf.xlu0
    %v106 = vpop.trf.xlu0
    %v107 = vpop.trf.xlu0
    %v108 = vpop.trf.xlu0
    %v109 = vpop.trf.xlu0
    %v110 = vpop.trf.xlu0
    %v111 = vpop.trf.xlu0
    %v112 = vpack.c.bf16 %v65, %v64
    %v113 = vpack.c.bf16 %v97, %v96
    %v114 = vpack.c.bf16 %v67, %v66
    %v115 = vpack.c.bf16 %v99, %v98
    %v116 = vpack.c.bf16 %v69, %v68
    %v117 = vpack.c.bf16 %v101, %v100
    %v118 = vpack.c.bf16 %v71, %v70
    %v119 = vpack.c.bf16 %v103, %v102
    %v120 = vld [vmem:[%s1] sm:$0xf]
    %v121 = vld [vmem:[%s1 + $0x4] sm:$0xf]
    %v122 = vld [vmem:[%s1 + $0x8] sm:$0xf]
    %v123 = vld [vmem:[%s1 + $0xc] sm:$0xf]
    %v124 = vld [vmem:[%s1 + $0x10] sm:$0xf]
    %v125 = vld [vmem:[%s1 + $0x14] sm:$0xf]
    %v126 = vld [vmem:[%s1 + $0x18] sm:$0xf]
    %v127 = vld [vmem:[%s1 + $0x1c] sm:$0xf]
    %v128 = vld [vmem:[%s2] sm:$0xff]
    %v129 = vld [vmem:[%s2 + $0x8] sm:$0xff]
    %v130 = vld [vmem:[%s2 + $0x10] sm:$0xff]
    %v131 = vld [vmem:[%s2 + $0x18] sm:$0xff]
    %v132 = vld [vmem:[%s2 + $0x20] sm:$0xff]
    %v133 = vld [vmem:[%s2 + $0x28] sm:$0xff]
    %v134 = vld [vmem:[%s2 + $0x30] sm:$0xff]
    %v135 = vld [vmem:[%s2 + $0x38] sm:$0xff]
    %137 = vset.pattern.permute.xlu0 0
    %138 = vperm.xlu0 %137, %v128
    %v139 = vpop.permute.xlu0 %138
    %142 = vset.pattern.permute.xlu0 0
    %143 = vperm.xlu0 %142, %v129
    %v144 = vpop.permute.xlu0 %143
    %147 = vset.pattern.permute.xlu0 0
    %148 = vperm.xlu0 %147, %v130
    %v149 = vpop.permute.xlu0 %148
    %152 = vset.pattern.permute.xlu0 0
    %153 = vperm.xlu0 %152, %v131
    %v154 = vpop.permute.xlu0 %153
    %157 = vset.pattern.permute.xlu0 0
    %158 = vperm.xlu0 %157, %v132
    %v159 = vpop.permute.xlu0 %158
    %162 = vset.pattern.permute.xlu0 0
    %163 = vperm.xlu0 %162, %v133
    %v164 = vpop.permute.xlu0 %163
    %167 = vset.pattern.permute.xlu0 0
    %168 = vperm.xlu0 %167, %v134
    %v169 = vpop.permute.xlu0 %168
    %172 = vset.pattern.permute.xlu0 0
    %173 = vperm.xlu0 %172, %v135
    %v174 = vpop.permute.xlu0 %173
    %v184 = vunpack.c.l.b16 %v120
    %v185 = vunpack.c.l.b16 %v121
    %v186 = vunpack.c.l.b16 %v122
    %v187 = vunpack.c.l.b16 %v123
    %v188 = vunpack.c.l.b16 %v124
    %v189 = vunpack.c.l.b16 %v125
    %v190 = vunpack.c.l.b16 %v126
    %v191 = vunpack.c.l.b16 %v127
    %v192 = vpack.c.b16 %v185, %v184
    %v193 = vpack.c.b16 %v187, %v186
    %v194 = vpack.c.b16 %v189, %v188
    %v195 = vpack.c.b16 %v191, %v190
    %vm196 = vcmask 523264
    %v198 = vsel %vm196, %v192, 0
    %v201 = vsel %vm196, %v193, 0
    %v204 = vsel %vm196, %v194, 0
    %v207 = vsel %vm196, %v195, 0
    %209 = vmatprep.subr.bf16.mxu0 0
    %210 = vmatpush1.bf16.msra.mxu0 0
    %211 = vmatprep.subr.bf16.mxu0 0
    %212 = vmatpush1.bf16.msra.mxu0 0
    %213 = vmatprep.subr.bf16.mxu0 0
    %214 = vmatpush1.bf16.msra.mxu0 0
    %215 = vmatprep.subr.bf16.mxu0 0
    %216 = vmatpush1.bf16.msra.mxu0 0
    %217 = vmatprep.subr.bf16.mxu0 %v119
    %218 = vmatpush1.bf16.msra.mxu0 %v118
    %219 = vmatprep.subr.bf16.mxu0 %v117
    %220 = vmatpush1.bf16.msra.mxu0 %v116
    %221 = vmatprep.subr.bf16.mxu0 %v115
    %222 = vmatpush1.bf16.msra.mxu0 %v114
    %223 = vmatprep.subr.bf16.mxu0 %v113
    %224 = vmatpush1.bf16.msra.mxu0 %v112
    %225 = vmatprep.subr.bf16.mxu0 0
    %226 = vmatpush2.bf16.msra.mxu0 0
    %227 = vmatprep.subr.bf16.mxu0 0
    %228 = vmatpush2.bf16.msra.mxu0 0
    %229 = vmatprep.subr.bf16.mxu0 0
    %230 = vmatpush2.bf16.msra.mxu0 0
    %231 = vmatprep.subr.bf16.mxu0 0
    %232 = vmatpush2.bf16.msra.mxu0 0
    %233 = vmatprep.subr.bf16.mxu0 0
    %234 = vmatpush2.bf16.msra.mxu0 0
    %235 = vmatprep.subr.bf16.mxu0 0
    %236 = vmatpush2.bf16.msra.mxu0 0
    %237 = vmatprep.subr.bf16.mxu0 0
    %238 = vmatpush2.bf16.msra.mxu0 0
    %239 = vmatprep.subr.bf16.mxu0 0
    %240 = vmatpush2.bf16.msra.mxu0 0
    %241 = vmatprep.mubr.bf16.mxu0 0
    %242 = vmatmul.mubr.bf16.gmra.mxu0 %v198
    %v243 = vpop.f32.mrf.mxu0
    %v244 = vadd.f32 %v139, %v243
    %v245 = vpop.f32.mrf.mxu0
    %v246 = vadd.f32 %v139, %v245
    %v247 = vpop.f32.mrf.mxu0
    %v248 = vadd.f32 %v144, %v247
    %v249 = vpop.f32.mrf.mxu0
    %v250 = vadd.f32 %v144, %v249
    %251 = vmatprep.mubr.bf16.mxu0 0
    %252 = vmatmul.mubr.bf16.gmra.mxu0 %v201
    %v253 = vpop.f32.mrf.mxu0
    %v254 = vadd.f32 %v149, %v253
    %v255 = vpop.f32.mrf.mxu0
    %v256 = vadd.f32 %v149, %v255
    %v257 = vpop.f32.mrf.mxu0
    %v258 = vadd.f32 %v154, %v257
    %v259 = vpop.f32.mrf.mxu0
    %v260 = vadd.f32 %v154, %v259
    %261 = vmatprep.mubr.bf16.mxu0 0
    %262 = vmatmul.mubr.bf16.gmra.mxu0 %v204
    %v263 = vpop.f32.mrf.mxu0
    %v264 = vadd.f32 %v159, %v263
    %v265 = vpop.f32.mrf.mxu0
    %v266 = vadd.f32 %v159, %v265
    %v267 = vpop.f32.mrf.mxu0
    %v268 = vadd.f32 %v164, %v267
    %v269 = vpop.f32.mrf.mxu0
    %v270 = vadd.f32 %v164, %v269
    %271 = vmatprep.mubr.bf16.mxu0 0
    %272 = vmatmul.mubr.bf16.gmra.mxu0 %v207
    %v273 = vpop.f32.mrf.mxu0
    %v274 = vadd.f32 %v169, %v273
    %v275 = vpop.f32.mrf.mxu0
    %v276 = vadd.f32 %v169, %v275
    %v277 = vpop.f32.mrf.mxu0
    %v278 = vadd.f32 %v174, %v277
    %v279 = vpop.f32.mrf.mxu0
    %v280 = vadd.f32 %v174, %v279
    %281 = vdwg.mxu0
    %v282 = vmax.f32 %v244, 0.0
    %v283 = vmax.f32 %v246, 0.0
    %v284 = vmax.f32 %v248, 0.0
    %v285 = vmax.f32 %v250, 0.0
    %v286 = vmax.f32 %v254, 0.0
    %v287 = vmax.f32 %v256, 0.0
    %v288 = vmax.f32 %v258, 0.0
    %v289 = vmax.f32 %v260, 0.0
    %v290 = vmax.f32 %v264, 0.0
    %v291 = vmax.f32 %v266, 0.0
    %v292 = vmax.f32 %v268, 0.0
    %v293 = vmax.f32 %v270, 0.0
    %v294 = vmax.f32 %v274, 0.0
    %v295 = vmax.f32 %v276, 0.0
    %v296 = vmax.f32 %v278, 0.0
    %v297 = vmax.f32 %v280, 0.0
    %v298 = vpack.c.bf16 %v284, %v282
    %v299 = vpack.c.bf16 %v285, %v283
    %v300 = vpack.c.bf16 %v288, %v286
    %v301 = vpack.c.bf16 %v289, %v287
    %v302 = vpack.c.bf16 %v292, %v290
    %v303 = vpack.c.bf16 %v293, %v291
    %v304 = vpack.c.bf16 %v296, %v294
    %v305 = vpack.c.bf16 %v297, %v295
    %v306 = vld [vmem:[%s1 + $0x20] sm:$0xf]
    %v307 = vld [vmem:[%s1 + $0x24] sm:$0xf]
    %v308 = vld [vmem:[%s1 + $0x28] sm:$0xf]
    %v309 = vld [vmem:[%s1 + $0x2c] sm:$0xf]
    %v310 = vld [vmem:[%s1 + $0x30] sm:$0xf]
    %v311 = vld [vmem:[%s1 + $0x34] sm:$0xf]
    %v312 = vld [vmem:[%s2 + $0x40] sm:$0xff]
    %v313 = vld [vmem:[%s2 + $0x48] sm:$0xff]
    %v314 = vld [vmem:[%s2 + $0x50] sm:$0xff]
    %v315 = vld [vmem:[%s2 + $0x58] sm:$0xff]
    %v316 = vld [vmem:[%s2 + $0x60] sm:$0xff]
    %v317 = vld [vmem:[%s2 + $0x68] sm:$0xff]
    %319 = vset.pattern.permute.xlu0 0
    %320 = vperm.xlu0 %319, %v312
    %v321 = vpop.permute.xlu0 %320
    %324 = vset.pattern.permute.xlu0 0
    %325 = vperm.xlu0 %324, %v313
    %v326 = vpop.permute.xlu0 %325
    %329 = vset.pattern.permute.xlu0 0
    %330 = vperm.xlu0 %329, %v314
    %v331 = vpop.permute.xlu0 %330
    %334 = vset.pattern.permute.xlu0 0
    %335 = vperm.xlu0 %334, %v315
    %v336 = vpop.permute.xlu0 %335
    %339 = vset.pattern.permute.xlu0 0
    %340 = vperm.xlu0 %339, %v316
    %v341 = vpop.permute.xlu0 %340
    %344 = vset.pattern.permute.xlu0 0
    %345 = vperm.xlu0 %344, %v317
    %v346 = vpop.permute.xlu0 %345
    %v354 = vunpack.c.l.b16 %v306
    %v355 = vunpack.c.l.b16 %v307
    %v356 = vunpack.c.l.b16 %v308
    %v357 = vunpack.c.l.b16 %v309
    %v358 = vunpack.c.l.b16 %v310
    %v359 = vunpack.c.l.b16 %v311
    %v360 = vpack.c.b16 %v355, %v354
    %v361 = vpack.c.b16 %v357, %v356
    %v362 = vpack.c.b16 %v359, %v358
    %v364 = vsel %vm196, %v360, 0
    %v367 = vsel %vm196, %v361, 0
    %v370 = vsel %vm196, %v362, 0
    %372 = vmatprep.subr.bf16.mxu0 0
    %373 = vmatpush1.bf16.msra.mxu0 0
    %374 = vmatprep.subr.bf16.mxu0 0
    %375 = vmatpush1.bf16.msra.mxu0 0
    %376 = vmatprep.subr.bf16.mxu0 0
    %377 = vmatpush1.bf16.msra.mxu0 0
    %378 = vmatprep.subr.bf16.mxu0 0
    %379 = vmatpush1.bf16.msra.mxu0 0
    %380 = vmatprep.subr.bf16.mxu0 %v305
    %381 = vmatpush1.bf16.msra.mxu0 %v304
    %382 = vmatprep.subr.bf16.mxu0 %v303
    %383 = vmatpush1.bf16.msra.mxu0 %v302
    %384 = vmatprep.subr.bf16.mxu0 %v301
    %385 = vmatpush1.bf16.msra.mxu0 %v300
    %386 = vmatprep.subr.bf16.mxu0 %v299
    %387 = vmatpush1.bf16.msra.mxu0 %v298
    %388 = vmatprep.subr.bf16.mxu0 0
    %389 = vmatpush2.bf16.msra.mxu0 0
    %390 = vmatprep.subr.bf16.mxu0 0
    %391 = vmatpush2.bf16.msra.mxu0 0
    %392 = vmatprep.subr.bf16.mxu0 0
    %393 = vmatpush2.bf16.msra.mxu0 0
    %394 = vmatprep.subr.bf16.mxu0 0
    %395 = vmatpush2.bf16.msra.mxu0 0
    %396 = vmatprep.subr.bf16.mxu0 0
    %397 = vmatpush2.bf16.msra.mxu0 0
    %398 = vmatprep.subr.bf16.mxu0 0
    %399 = vmatpush2.bf16.msra.mxu0 0
    %400 = vmatprep.subr.bf16.mxu0 0
    %401 = vmatpush2.bf16.msra.mxu0 0
    %402 = vmatprep.subr.bf16.mxu0 0
    %403 = vmatpush2.bf16.msra.mxu0 0
    %404 = vmatprep.mubr.bf16.mxu0 0
    %405 = vmatmul.mubr.bf16.gmra.mxu0 %v364
    %v406 = vpop.f32.mrf.mxu0
    %v407 = vadd.f32 %v321, %v406
    %v408 = vpop.f32.mrf.mxu0
    %v409 = vadd.f32 %v321, %v408
    %v410 = vpop.f32.mrf.mxu0
    %v411 = vadd.f32 %v326, %v410
    %v412 = vpop.f32.mrf.mxu0
    %v413 = vadd.f32 %v326, %v412
    %414 = vmatprep.mubr.bf16.mxu0 0
    %415 = vmatmul.mubr.bf16.gmra.mxu0 %v367
    %v416 = vpop.f32.mrf.mxu0
    %v417 = vadd.f32 %v331, %v416
    %v418 = vpop.f32.mrf.mxu0
    %v419 = vadd.f32 %v331, %v418
    %v420 = vpop.f32.mrf.mxu0
    %v421 = vadd.f32 %v336, %v420
    %v422 = vpop.f32.mrf.mxu0
    %v423 = vadd.f32 %v336, %v422
    %424 = vmatprep.mubr.bf16.mxu0 0
    %425 = vmatmul.mubr.bf16.gmra.mxu0 %v370
    %v426 = vpop.f32.mrf.mxu0
    %v427 = vadd.f32 %v341, %v426
    %v428 = vpop.f32.mrf.mxu0
    %v429 = vadd.f32 %v341, %v428
    %v430 = vpop.f32.mrf.mxu0
    %v431 = vadd.f32 %v346, %v430
    %v432 = vpop.f32.mrf.mxu0
    %v433 = vadd.f32 %v346, %v432
    %434 = vdwg.mxu0
    %v435 = vmax.f32 %v407, 0.0
    %v436 = vmax.f32 %v409, 0.0
    %v437 = vmax.f32 %v411, 0.0
    %v438 = vmax.f32 %v413, 0.0
    %v439 = vmax.f32 %v417, 0.0
    %v440 = vmax.f32 %v419, 0.0
    %v441 = vmax.f32 %v421, 0.0
    %v442 = vmax.f32 %v423, 0.0
    %v443 = vmax.f32 %v427, 0.0
    %v444 = vmax.f32 %v429, 0.0
    %v445 = vmax.f32 %v431, 0.0
    %v446 = vmax.f32 %v433, 0.0
    %v447 = vpack.c.bf16 %v437, %v435
    %v448 = vpack.c.bf16 %v438, %v436
    %v449 = vpack.c.bf16 %v441, %v439
    %v450 = vpack.c.bf16 %v442, %v440
    %v451 = vpack.c.bf16 %v445, %v443
    %v452 = vpack.c.bf16 %v446, %v444
    %v453 = vld [vmem:[%s1 + $0x38] sm:$0xf]
    %v454 = vld [vmem:[%s1 + $0x3c] sm:$0xf]
    %v455 = vld [vmem:[%s1 + $0x40] sm:$0xf]
    %v456 = vld [vmem:[%s1 + $0x44] sm:$0xf]
    %v457 = vld [vmem:[%s2 + $0x70] sm:$0xff]
    %v458 = vld [vmem:[%s2 + $0x78] sm:$0xff]
    %v459 = vld [vmem:[%s2 + $0x80] sm:$0xff]
    %v460 = vld [vmem:[%s2 + $0x88] sm:$0xff]
    %462 = vset.pattern.permute.xlu0 0
    %463 = vperm.xlu0 %462, %v457
    %v464 = vpop.permute.xlu0 %463
    %467 = vset.pattern.permute.xlu0 0
    %468 = vperm.xlu0 %467, %v458
    %v469 = vpop.permute.xlu0 %468
    %472 = vset.pattern.permute.xlu0 0
    %473 = vperm.xlu0 %472, %v459
    %v474 = vpop.permute.xlu0 %473
    %477 = vset.pattern.permute.xlu0 0
    %478 = vperm.xlu0 %477, %v460
    %v479 = vpop.permute.xlu0 %478
    %v485 = vunpack.c.l.b16 %v453
    %v486 = vunpack.c.l.b16 %v454
    %v487 = vunpack.c.l.b16 %v455
    %v488 = vunpack.c.l.b16 %v456
    %v489 = vpack.c.b16 %v486, %v485
    %v490 = vpack.c.b16 %v488, %v487
    %vm491 = vcmask 392192
    %v493 = vsel %vm491, %v489, 0
    %v496 = vsel %vm491, %v490, 0
    %498 = vmatprep.subr.bf16.mxu0 0
    %499 = vmatpush1.bf16.msra.mxu0 0
    %500 = vmatprep.subr.bf16.mxu0 0
    %501 = vmatpush1.bf16.msra.mxu0 0
    %502 = vmatprep.subr.bf16.mxu0 0
    %503 = vmatpush1.bf16.msra.mxu0 0
    %504 = vmatprep.subr.bf16.mxu0 0
    %505 = vmatpush1.bf16.msra.mxu0 0
    %506 = vmatprep.subr.bf16.mxu0 0
    %507 = vmatpush1.bf16.msra.mxu0 0
    %508 = vmatprep.subr.bf16.mxu0 %v452
    %509 = vmatpush1.bf16.msra.mxu0 %v451
    %510 = vmatprep.subr.bf16.mxu0 %v450
    %511 = vmatpush1.bf16.msra.mxu0 %v449
    %512 = vmatprep.subr.bf16.mxu0 %v448
    %513 = vmatpush1.bf16.msra.mxu0 %v447
    %514 = vmatprep.subr.bf16.mxu0 0
    %515 = vmatpush2.bf16.msra.mxu0 0
    %516 = vmatprep.subr.bf16.mxu0 0
    %517 = vmatpush2.bf16.msra.mxu0 0
    %518 = vmatprep.subr.bf16.mxu0 0
    %519 = vmatpush2.bf16.msra.mxu0 0
    %520 = vmatprep.subr.bf16.mxu0 0
    %521 = vmatpush2.bf16.msra.mxu0 0
    %522 = vmatprep.subr.bf16.mxu0 0
    %523 = vmatpush2.bf16.msra.mxu0 0
    %524 = vmatprep.subr.bf16.mxu0 0
    %525 = vmatpush2.bf16.msra.mxu0 0
    %526 = vmatprep.subr.bf16.mxu0 0
    %527 = vmatpush2.bf16.msra.mxu0 0
    %528 = vmatprep.subr.bf16.mxu0 0
    %529 = vmatpush2.bf16.msra.mxu0 0
    %530 = vmatprep.mubr.bf16.mxu0 0
    %531 = vmatmul.mubr.bf16.gmra.mxu0 %v493
    %v532 = vpop.f32.mrf.mxu0
    %v533 = vadd.f32 %v464, %v532
    %v534 = vpop.f32.mrf.mxu0
    %v535 = vadd.f32 %v464, %v534
    %v536 = vpop.f32.mrf.mxu0
    %v537 = vadd.f32 %v469, %v536
    %v538 = vpop.f32.mrf.mxu0
    %v539 = vadd.f32 %v469, %v538
    %540 = vmatprep.mubr.bf16.mxu0 0
    %541 = vmatmul.mubr.bf16.gmra.mxu0 %v496
    %v542 = vpop.f32.mrf.mxu0
    %v543 = vadd.f32 %v474, %v542
    %v544 = vpop.f32.mrf.mxu0
    %v545 = vadd.f32 %v474, %v544
    %v546 = vpop.f32.mrf.mxu0
    %v547 = vadd.f32 %v479, %v546
    %v548 = vpop.f32.mrf.mxu0
    %v549 = vadd.f32 %v479, %v548
    %550 = vdwg.mxu0
    %v551 = vmax.f32 %v533, 0.0
    %v552 = vmax.f32 %v535, 0.0
    %v553 = vmax.f32 %v537, 0.0
    %v554 = vmax.f32 %v539, 0.0
    %v555 = vmax.f32 %v543, 0.0
    %v556 = vmax.f32 %v545, 0.0
    %v557 = vmax.f32 %v547, 0.0
    %v558 = vmax.f32 %v549, 0.0
    %v559 = vpack.c.bf16 %v553, %v551
    %v560 = vpack.c.bf16 %v554, %v552
    %v561 = vpack.c.bf16 %v557, %v555
    %v562 = vpack.c.bf16 %v558, %v556
    %v563 = vld [vmem:[%s1 + $0x48] sm:$0xf]
    %v564 = vld [vmem:[%s1 + $0x4c] sm:$0xf]
    %v565 = vld [vmem:[%s2 + $0x90] sm:$0xff]
    %v566 = vld [vmem:[%s2 + $0x98] sm:$0xff]
    %568 = vset.pattern.permute.xlu0 0
    %569 = vperm.xlu0 %568, %v565
    %v570 = vpop.permute.xlu0 %569
    %573 = vset.pattern.permute.xlu0 0
    %574 = vperm.xlu0 %573, %v566
    %v575 = vpop.permute.xlu0 %574
    %v579 = vunpack.c.l.b16 %v563
    %v580 = vunpack.c.l.b16 %v564
    %v581 = vpack.c.b16 %v580, %v579
    %vm582 = vcmask 261120
    %v584 = vsel %vm582, %v581, 0
    %586 = vmatprep.subr.bf16.mxu0 0
    %587 = vmatpush1.bf16.msra.mxu0 0
    %588 = vmatprep.subr.bf16.mxu0 0
    %589 = vmatpush1.bf16.msra.mxu0 0
    %590 = vmatprep.subr.bf16.mxu0 0
    %591 = vmatpush1.bf16.msra.mxu0 0
    %592 = vmatprep.subr.bf16.mxu0 0
    %593 = vmatpush1.bf16.msra.mxu0 0
    %594 = vmatprep.subr.bf16.mxu0 0
    %595 = vmatpush1.bf16.msra.mxu0 0
    %596 = vmatprep.subr.bf16.mxu0 0
    %597 = vmatpush1.bf16.msra.mxu0 0
    %598 = vmatprep.subr.bf16.mxu0 %v562
    %599 = vmatpush1.bf16.msra.mxu0 %v561
    %600 = vmatprep.subr.bf16.mxu0 %v560
    %601 = vmatpush1.bf16.msra.mxu0 %v559
    %602 = vmatprep.subr.bf16.mxu0 0
    %603 = vmatpush2.bf16.msra.mxu0 0
    %604 = vmatprep.subr.bf16.mxu0 0
    %605 = vmatpush2.bf16.msra.mxu0 0
    %606 = vmatprep.subr.bf16.mxu0 0
    %607 = vmatpush2.bf16.msra.mxu0 0
    %608 = vmatprep.subr.bf16.mxu0 0
    %609 = vmatpush2.bf16.msra.mxu0 0
    %610 = vmatprep.subr.bf16.mxu0 0
    %611 = vmatpush2.bf16.msra.mxu0 0
    %612 = vmatprep.subr.bf16.mxu0 0
    %613 = vmatpush2.bf16.msra.mxu0 0
    %614 = vmatprep.subr.bf16.mxu0 0
    %615 = vmatpush2.bf16.msra.mxu0 0
    %616 = vmatprep.subr.bf16.mxu0 0
    %617 = vmatpush2.bf16.msra.mxu0 0
    %618 = vmatprep.mubr.bf16.mxu0 0
    %619 = vmatmul.mubr.bf16.gmra.mxu0 %v584
    %v620 = vpop.f32.mrf.mxu0
    %v621 = vadd.f32 %v570, %v620
    %v622 = vpop.f32.mrf.mxu0
    %v623 = vadd.f32 %v570, %v622
    %v624 = vpop.f32.mrf.mxu0
    %v625 = vadd.f32 %v575, %v624
    %v626 = vpop.f32.mrf.mxu0
    %v627 = vadd.f32 %v575, %v626
    %628 = vdwg.mxu0
    %v629 = vmax.f32 %v621, 0.0
    %v630 = vmax.f32 %v623, 0.0
    %v631 = vmax.f32 %v625, 0.0
    %v632 = vmax.f32 %v627, 0.0
    %v633 = vpack.c.bf16 %v631, %v629
    %v634 = vpack.c.bf16 %v632, %v630
    %v635 = vld [vmem:[%s1 + $0x50] sm:$0x1]
    %v636 = vld [vmem:[%s2 + $0xa0] sm:$0x1]
    %638 = vset.pattern.permute.xlu0 0
    %639 = vperm.xlu0 %638, %v636
    %v640 = vpop.permute.xlu0 %639
    %vm642 = vcmask 130048
    %v644 = vsel %vm642, %v635, 0
    %646 = vmatprep.subr.bf16.mxu0 0
    %647 = vmatpush1.bf16.msra.mxu0 0
    %648 = vmatprep.subr.bf16.mxu0 0
    %649 = vmatpush1.bf16.msra.mxu0 0
    %650 = vmatprep.subr.bf16.mxu0 0
    %651 = vmatpush1.bf16.msra.mxu0 0
    %652 = vmatprep.subr.bf16.mxu0 0
    %653 = vmatpush1.bf16.msra.mxu0 0
    %654 = vmatprep.subr.bf16.mxu0 0
    %655 = vmatpush1.bf16.msra.mxu0 0
    %656 = vmatprep.subr.bf16.mxu0 0
    %657 = vmatpush1.bf16.msra.mxu0 0
    %658 = vmatprep.subr.bf16.mxu0 0
    %659 = vmatpush1.bf16.msra.mxu0 0
    %660 = vmatprep.subr.bf16.mxu0 %v634
    %661 = vmatpush1.bf16.msra.mxu0 %v633
    %662 = vmatprep.subr.bf16.mxu0 0
    %663 = vmatpush2.bf16.msra.mxu0 0
    %664 = vmatprep.subr.bf16.mxu0 0
    %665 = vmatpush2.bf16.msra.mxu0 0
    %666 = vmatprep.subr.bf16.mxu0 0
    %667 = vmatpush2.bf16.msra.mxu0 0
    %668 = vmatprep.subr.bf16.mxu0 0
    %669 = vmatpush2.bf16.msra.mxu0 0
    %670 = vmatprep.subr.bf16.mxu0 0
    %671 = vmatpush2.bf16.msra.mxu0 0
    %672 = vmatprep.subr.bf16.mxu0 0
    %673 = vmatpush2.bf16.msra.mxu0 0
    %674 = vmatprep.subr.bf16.mxu0 0
    %675 = vmatpush2.bf16.msra.mxu0 0
    %676 = vmatprep.subr.bf16.mxu0 0
    %677 = vmatpush2.bf16.msra.mxu0 0
    %678 = vmatprep.mubr.bf16.mxu0 0
    %679 = vmatmul.mubr.bf16.gmra.mxu0 %v644
    %v680 = vpop.f32.mrf.mxu0
    %v681 = vadd.f32 %v640, %v680
    %v682 = vpop.f32.mrf.mxu0
    %v683 = vadd.f32 %v640, %v682
    %v684 = vpop.f32.mrf.mxu0
    %v685 = vpop.f32.mrf.mxu0
    %686 = vdwg.mxu0
    %v687 = vxor.u32 %v681, 2147483648
    %v688 = vxor.u32 %v683, 2147483648
    %v689 = vmul.f32 %v687, 1.442695
    %v690 = vpow.pop %v689
    %v691 = vmul.f32 %v688, 1.442695
    %v692 = vpow.pop %v691
    %v693 = vadd.f32 %v690, 1.0
    %v694 = vadd.f32 %v692, 1.0
    %v695 = vrcp.pop %v693
    %v696 = vmul.f32 1.0, %v695
    %v697 = vrcp.pop %v694
    %v698 = vmul.f32 1.0, %v697
    %v701 = vcombine.low %v696, %v698
    %v703 = vunpack.c.l.s4 1966171168
    %v704 = vunpack.c.0.s8 %v703
    %v705 = vlaneseq
    %v706 = vshrl.u32 %v705, 7
    %v707 = vsub.s32 %v704, %v706
    %v708 = vrot.slane %v701, %v707
    %v710 = vunpack.c.l.s4 1966171168
    %v711 = vunpack.c.0.s8 %v710
    %v712 = vlaneseq
    %v713 = vshrl.u32 %v712, 7
    %v714 = vsub.s32 %v711, %v713
    %v715 = vrot.slane %v708, %v714
    %v717 = vlaneseq
    %vm718 = vcmp.ge.s32.totalorder %v717, 0
    %vm719 = vcmp.lt.s32.totalorder %v717, 256
    %vm720 = vmand %vm718, %vm719
    %721 = vst.msk [vmem:[#allocation2] sm:$0x3] %vm720, %v715
    // Predicated region
    $region14: #{tpu_custom_call.1} parent=1 // pred_check
      _
    $region15: #{tpu_custom_call.1} parent=1 // pred_check_branch
      %723 = sbr.rel (0) target = $region17
    $region16: #{tpu_custom_call.1} parent=1 // pred_region
      %s725 = ssub.s32 32, 32
      %726 = vsyncadd [#allocation3], %s725
      %s728 = sshll.u32 [#allocation2], 4
      %s729 = int_to_ptr.vmem [resolvable:$true] %s728
      %731 = dma.vmem_to_hbm [thread:$0]  %s729, 32, %s3, [#allocation3]
    $region17: #{tpu_custom_call.1} parent=1 // pred_fallthru
      _
    // Predicated region
    $region18: #{tpu_custom_call.1} parent=1 // pred_check
      _
    $region19: #{tpu_custom_call.1} parent=1 // pred_check_branch
      %733 = sbr.rel (0) target = $region21
    $region20: #{tpu_custom_call.1} parent=1 // pred_region
      %734 = dma.done [#allocation3], 32
    $region21: #{tpu_custom_call.1} parent=1 // pred_fallthru
      _
    %735 = vsyncpa [#allocation3], 1

</llo_original>
